<compile_context>
chip_gen: v6e
topology: v6e:2x2x1
jax: 0.10.0
libtpu: 0.0.40
codegen_flags: <defaults>
</compile_context>

<pallas_src>
import math

import jax
import jax.numpy as jnp
from jax.experimental import pallas as pl
from jax.experimental.pallas import tpu as pltpu


def _pos_enc_kernel(x_ref, pe_ref, o_ref):
    # x_ref : VMEM (TB, TS, D) activation block
    # pe_ref: VMEM (TS, D)     positional-encoding block (shared across batch)
    # o_ref : VMEM (TB, TS, D) output block
    o_ref[...] = (x_ref[...] + pe_ref[...]).astype(o_ref.dtype)


def make_positional_encoding_table(D, max_len=5000, dtype=jnp.float32):
    """The `pe` buffer of the torch module: (max_len, D) sinusoidal table.

    Build it once (mirrors register_buffer) in the model's activation dtype
    so the kernel never pays a dtype-conversion or extra-bandwidth cost.
    """
    position = jnp.arange(max_len, dtype=jnp.float32)[:, None]          # (L, 1)
    div_term = jnp.exp(
        jnp.arange(0, D, 2, dtype=jnp.float32) * (-math.log(10000.0) / D))
    angles = position * div_term                                        # (L, ceil(D/2))
    pe = jnp.zeros((max_len, D), dtype=jnp.float32)
    pe = pe.at[:, 0::2].set(jnp.sin(angles))
    pe = pe.at[:, 1::2].set(jnp.cos(angles)[:, : D // 2])               # odd-D safe
    return pe.astype(dtype)


def positional_encoding_forward(x, pe, *, donate_x=False):
    """x: (B, S, D); pe: (max_len, D).  Returns x + pe[:S] (eval-mode dropout)."""
    B, S, D = x.shape
    max_len, D_pe = pe.shape
    assert D_pe == D and S <= max_len

    # TODO(synk): training-mode dropout (p=0.1) not implemented; this forward
    # matches the module in eval() mode where nn.Dropout is the identity.

    x_isz = jnp.dtype(x.dtype).itemsize
    pe_isz = jnp.dtype(pe.dtype).itemsize

    # ---- Generation-aware VMEM budget (v5e/v6e: 128 MiB, v7x: 64 MiB/TC) ----
    try:
        vmem_cap = int(pltpu.get_tpu_info().vmem_capacity_bytes)
    except Exception:
        vmem_cap = 64 << 20                       # conservative (v7x) fallback
    vmem_budget = min(vmem_cap * 3 // 4, 100 << 20)   # ~48 MiB v7x, ~96 MiB v5e/v6e

    # ---- Tile selection: move >= ~target bytes of x per grid step ----------
    # 6x the target (2x x + 2x out + up to 2x pe double-buffered) stays well
    # under half the budget.
    target_blk = min(8 << 20, vmem_budget // 12)  # 4 MiB (v7x) / 8 MiB (v5e/v6e)
    row = D * x_isz

    pe_in = pe
    if S * row <= target_blk:
        # Whole sequence in one block.
        TS = S
        if S % 8 != 0:
            # Rare unaligned case: the (TS, D) pe block needs TS % 8 == 0 or a
            # full-extent dim, so slice the table down to length S (cheap: the
            # whole sequence is < target_blk bytes here).
            pe_in = pe[:S]
    else:
        # Multiple-of-8 sequence tile, <= one target-sized slab of x rows.
        TS = max(8, min((target_blk // row) // 8 * 8, (S // 8) * 8))

    # Batch tile: grow until each step moves ~target_blk bytes of x.
    TB = max(1, min(B, int(target_blk // max(TS * row, 1))))

    def _vmem_use(tb, ts):
        # double-buffered x + out blocks, double-buffered pe block
        return 4 * tb * ts * row + 2 * ts * D * pe_isz

    # Safeguards (never trigger with the targets above, but keep them honest).
    while TB > 1 and _vmem_use(TB, TS) > vmem_budget:
        TB -= 1
    while TS > 8 and _vmem_use(TB, TS) > vmem_budget:
        TS = max(8, (TS // 2) // 8 * 8)

    # Batch innermost -> the pe block index is constant across it (no re-DMA).
    grid = (pl.cdiv(S, TS), pl.cdiv(B, TB))

    return pl.pallas_call(
        _pos_enc_kernel,
        out_shape=jax.ShapeDtypeStruct((B, S, D), x.dtype),
        grid=grid,
        in_specs=[
            pl.BlockSpec((TB, TS, D), lambda si, bi: (bi, si, 0)),   # x block
            pl.BlockSpec((TS, D), lambda si, bi: (si, 0)),           # pe block
        ],
        out_specs=pl.BlockSpec((TB, TS, D), lambda si, bi: (bi, si, 0)),
        compiler_params=pltpu.CompilerParams(
            dimension_semantics=("parallel", "parallel"),
            vmem_limit_bytes=vmem_budget,
        ),
        input_output_aliases=({0: 0} if donate_x else {}),
    )(x, pe_in)


if __name__ == "__main__":
    # Small deterministic setup consistent with PositionalEncoding(D).
    D = 128          # hidden size (lane-aligned)
    B, S = 2, 16     # batch, sequence length
    max_len = 5000   # module default

    key = jax.random.PRNGKey(0)
    x = jax.random.normal(key, (B, S, D), dtype=jnp.float32)

    # Build the pe buffer once, in the activation dtype.
    pe = make_positional_encoding_table(D, max_len=max_len, dtype=x.dtype)

    out = jax.block_until_ready(positional_encoding_forward(x, pe))

    # Reference: x + pe[:, :S, :] (dropout identity in eval mode).
    ref = x + pe[:S][None, :, :]
    assert out.shape == (B, S, D)
    assert jnp.allclose(out, ref, atol=1e-6, rtol=1e-6)

    print("KERNEL_OK")
</pallas_src>

<mosaic_0001>
module attributes {stable_mosaic.version = 11 : i64} {
  func.func @_pos_enc_kernel(%arg0: i32, %arg1: i32, %arg2: memref<2x16x128xf32, #tpu.memory_space<vmem>>, %arg3: memref<16x128xf32, #tpu.memory_space<vmem>>, %arg4: memref<2x16x128xf32, #tpu.memory_space<vmem>>) attributes {dimension_semantics = [#tpu.dimension_semantics<parallel>, #tpu.dimension_semantics<parallel>], iteration_bounds = array<i64: 1, 1>, scalar_prefetch = 0 : i64, scratch_operands = 0 : i64, tpu.core_type = #tpu.core_type<tc>, window_params = [{transform_indices = @transform_0, window_bounds = array<i64: 2, 16, 128>}, {transform_indices = @transform_1, window_bounds = array<i64: 16, 128>}, {transform_indices = @transform_2, window_bounds = array<i64: 2, 16, 128>}]} {
    %c0 = arith.constant 0 : index
    %c0_0 = arith.constant 0 : index
    %c0_1 = arith.constant 0 : index
    %0 = vector.load %arg2[%c0, %c0_0, %c0_1] : memref<2x16x128xf32, #tpu.memory_space<vmem>>, vector<2x16x128xf32>
    %c0_2 = arith.constant 0 : index
    %c0_3 = arith.constant 0 : index
    %1 = vector.load %arg3[%c0_2, %c0_3] : memref<16x128xf32, #tpu.memory_space<vmem>>, vector<16x128xf32>
    %2 = vector.shape_cast %1 : vector<16x128xf32> to vector<1x16x128xf32>
    %3 = vector.broadcast %2 : vector<1x16x128xf32> to vector<2x16x128xf32>
    %4 = arith.addf %0, %3 : vector<2x16x128xf32>
    %c0_4 = arith.constant 0 : index
    %c0_5 = arith.constant 0 : index
    %c0_6 = arith.constant 0 : index
    %5 = vector.load %arg4[%c0_4, %c0_5, %c0_6] : memref<2x16x128xf32, #tpu.memory_space<vmem>>, vector<2x16x128xf32>
    tpu.vector_store %arg4[%c0_4, %c0_5, %c0_6], %4 {strides = array<i32>} : memref<2x16x128xf32, #tpu.memory_space<vmem>>, vector<2x16x128xf32>,
    return
  }
  func.func @transform_0(%arg0: i32, %arg1: i32) -> (i32, i32, i32) {
    %c0_i32 = arith.constant 0 : i32
    %c0_i32_0 = arith.constant 0 : i32
    return %arg1, %arg0, %c0_i32 : i32, i32, i32
  }
  func.func @transform_1(%arg0: i32, %arg1: i32) -> (i32, i32) {
    %c0_i32 = arith.constant 0 : i32
    %c0_i32_0 = arith.constant 0 : i32
    return %arg0, %c0_i32 : i32, i32
  }
  func.func @transform_2(%arg0: i32, %arg1: i32) -> (i32, i32, i32) {
    %c0_i32 = arith.constant 0 : i32
    %c0_i32_0 = arith.constant 0 : i32
    return %arg1, %arg0, %c0_i32 : i32, i32, i32
  }
}

</mosaic_0001>

<llo_original>
// kernel: tpu_custom_call.1
$region0: #{tpu_custom_call.1}
  #allocation0 [shape = 'u32[]', space=smem, size = 0x4, offset = 0x4, fixed_abs, tag = 'smem constant byte address 0x4 - core index']
  #allocation1 [shape = 'u32[144,128]{1,0:T(1,128)}', space=vmem, size = 0x12000, scoped, tag = 'internal scratch']
  %s0 = inlined_call_operand.hbm [shape: f32[2,16,128], index: 0, kind: input, shape index: {}]
  %s1 = inlined_call_operand.hbm [shape: f32[5000,128], index: 1, kind: input, shape index: {}]
  %s2 = inlined_call_operand.hbm [shape: f32[2,16,128], index: 2, kind: output, shape index: {}]
  %s3 = sld [smem:[#allocation0]]
  $region26: #{tpu_custom_call.1} parent=0
    _
  %s5 = ssub.s32 1, %s3
  %s6 = scalar_select 0, %s5, %s3
  $region1: #{tpu_custom_call.1} parent=0
    #allocation2 [shape = 'u8[16384]{0}', space=vmem, size = 0x4000, scoped, tag = 'input window, operand 0, single buffered']
    #allocation3 [shape = 's32[1]{0}', space=sflag, size = 0x4, scoped, tag = 'scoped memory for tpu_custom_call.1']
    #allocation4 [shape = 's32[1]{0}', space=sflag, size = 0x4, scoped, tag = 'scoped memory for tpu_custom_call.1']
    #allocation5 [shape = 'u8[8192]{0}', space=vmem, size = 0x2000, scoped, tag = 'input window, operand 1, single buffered']
    #allocation6 [shape = 's32[1]{0}', space=sflag, size = 0x4, scoped, tag = 'scoped memory for tpu_custom_call.1']
    #allocation7 [shape = 'u8[16384]{0}', space=vmem, size = 0x4000, scoped, tag = 'output window, operand 0, single buffered']
    %7 = vsyncpa [#allocation3], 0
    %8 = vsyncpa [#allocation6], 0
    %9 = vsyncpa [#allocation4], 0
    // Predicated region
    $region2: #{tpu_custom_call.1} parent=1 // pred_check
      _
    $region3: #{tpu_custom_call.1} parent=1 // pred_check_branch
      %11 = sbr.rel (0) target = $region5
    $region4: #{tpu_custom_call.1} parent=1 // pred_region
      %s13 = ssub.s32 512, 512
      %14 = vsyncadd [#allocation3], %s13
      %s15 = sshll.u32 [#allocation2], 4
      %s16 = int_to_ptr.vmem [resolvable:$true] %s15
      %21 = dma.hbm_to_vmem [thread:$0]  %s0, 512, %s16, [#allocation3], 128, 128, 8
    $region5: #{tpu_custom_call.1} parent=1 // pred_fallthru
      _
    // Predicated region
    $region6: #{tpu_custom_call.1} parent=1 // pred_check
      _
    $region7: #{tpu_custom_call.1} parent=1 // pred_check_branch
      %23 = sbr.rel (0) target = $region9
    $region8: #{tpu_custom_call.1} parent=1 // pred_region
      %s25 = ssub.s32 256, 256
      %26 = vsyncadd [#allocation6], %s25
      %s27 = sshll.u32 [#allocation5], 4
      %s28 = int_to_ptr.vmem [resolvable:$true] %s27
      %33 = dma.hbm_to_vmem [thread:$0]  %s1, 256, %s28, [#allocation6], 128, 128, 8
    $region9: #{tpu_custom_call.1} parent=1 // pred_fallthru
      _
    // Predicated region
    $region10: #{tpu_custom_call.1} parent=1 // pred_check
      _
    $region11: #{tpu_custom_call.1} parent=1 // pred_check_branch
      %35 = sbr.rel (0) target = $region13
    $region12: #{tpu_custom_call.1} parent=1 // pred_region
      %36 = dma.done [#allocation3], 512
    $region13: #{tpu_custom_call.1} parent=1 // pred_fallthru
      _
    // Predicated region
    $region14: #{tpu_custom_call.1} parent=1 // pred_check
      _
    $region15: #{tpu_custom_call.1} parent=1 // pred_check_branch
      %38 = sbr.rel (0) target = $region17
    $region16: #{tpu_custom_call.1} parent=1 // pred_region
      %39 = dma.done [#allocation6], 256
    $region17: #{tpu_custom_call.1} parent=1 // pred_fallthru
      _
    %v40 = vld [vmem:[#allocation2] sm:$0xff]
    %v41 = vld [vmem:[#allocation2 + $0x8] sm:$0xff]
    %v42 = vld [vmem:[#allocation2 + $0x10] sm:$0xff]
    %v43 = vld [vmem:[#allocation2 + $0x18] sm:$0xff]
    %v44 = vld [vmem:[#allocation5] sm:$0xff]
    %v45 = vld [vmem:[#allocation5 + $0x8] sm:$0xff]
    %v46 = vadd.f32 %v40, %v44
    %v47 = vadd.f32 %v41, %v45
    %v48 = vadd.f32 %v42, %v44
    %v49 = vadd.f32 %v43, %v45
    %50 = vst [vmem:[#allocation7] sm:$0xff] %v46
    %51 = vst [vmem:[#allocation7 + $0x8] sm:$0xff] %v47
    %52 = vst [vmem:[#allocation7 + $0x10] sm:$0xff] %v48
    %53 = vst [vmem:[#allocation7 + $0x18] sm:$0xff] %v49
    // Predicated region
    $region18: #{tpu_custom_call.1} parent=1 // pred_check
      _
    $region19: #{tpu_custom_call.1} parent=1 // pred_check_branch
      %55 = sbr.rel (0) target = $region21
    $region20: #{tpu_custom_call.1} parent=1 // pred_region
      %s57 = ssub.s32 512, 512
      %58 = vsyncadd [#allocation4], %s57
      %s59 = sshll.u32 [#allocation7], 4
      %s60 = int_to_ptr.vmem [resolvable:$true] %s59
      %65 = dma.vmem_to_hbm [thread:$0]  %s60, 512, %s2, [#allocation4], 128, 128, 8
    $region21: #{tpu_custom_call.1} parent=1 // pred_fallthru
      _
    // Predicated region
    $region22: #{tpu_custom_call.1} parent=1 // pred_check
      _
    $region23: #{tpu_custom_call.1} parent=1 // pred_check_branch
      %67 = sbr.rel (0) target = $region25
    $region24: #{tpu_custom_call.1} parent=1 // pred_region
      %68 = dma.done [#allocation4], 512
    $region25: #{tpu_custom_call.1} parent=1 // pred_fallthru
      _
    %69 = vsyncpa [#allocation3], 1
    %70 = vsyncpa [#allocation6], 1
    %71 = vsyncpa [#allocation4], 1

</llo_original>
